<compile_context>
chip_gen: v6e
topology: v6e:2x2x1
jax: 0.10.0
libtpu: 0.0.40
codegen_flags: <defaults>
</compile_context>

<pallas_src>
import math

import jax
import jax.numpy as jnp
from jax.experimental import pallas as pl
from jax.experimental.pallas import tpu as pltpu


def _broadcast_param_kernel(res_ref, o_ref):
    # res_ref: (1, TW) VMEM tile (param row, resident), o_ref: (TB, TW) tile.
    o_ref[...] = jnp.broadcast_to(res_ref[...], o_ref.shape)


def _tpu_generation():
    """Best-effort TPU generation + TensorCores-per-chip detection."""
    try:
        kind = jax.devices()[0].device_kind.lower()
    except Exception:
        return "unknown", 1
    if "v7" in kind:
        return "v7x", 2
    if "v6" in kind:
        return "v6e", 1
    if "v5" in kind:
        return "v5e", 1
    return "unknown", 1


def _block_budget_bytes(gen):
    # Bigger blocks where HBM is fast (the ~0.35 us/step overhead bites),
    # conservative on v5e's 16 MiB scoped-VMEM default.
    if gen == "v7x":
        return 12 * 1024 * 1024
    if gen == "v6e":
        return 8 * 1024 * 1024
    return 4 * 1024 * 1024


def _pick_tiles(rows, width, itemsize, budget, cores):
    """Pick (row_tile, width_tile): bytes-budgeted, sublane/lane aligned."""
    row_bytes = width * itemsize
    # Width tile: keep the full width unless even an 8-row block would blow the
    # budget; only split when width is lane-aligned so interior stores stay unmasked.
    if width % 128 == 0 and row_bytes * 8 > budget:
        tw = max(128, (budget // (8 * itemsize)) // 128 * 128)
        tw = min(tw, width)
    else:
        tw = width
    # Row tile: bytes-budget only (no hard row cap), multiple of 8 sublanes.
    tb = budget // max(tw * itemsize, 1)
    tb = max(8, (tb // 8) * 8)
    if rows <= tb:
        tb = rows
    # Megacore (v7x): guarantee >= 2 row blocks on non-trivial outputs so the
    # "parallel" batch axis can shard across both TensorCores.
    total_bytes = rows * width * itemsize
    if cores >= 2 and total_bytes > (4 << 20) and rows > 8:
        half = -(-rows // 2)            # cdiv(rows, 2)
        half = ((half + 7) // 8) * 8    # round up to a sublane multiple
        tb = min(tb, max(8, half))
    return tb, tw


def parameter_result_forward(n, x, result, *, min_pallas_bytes=1 << 20):
    """Mirror ParameterResult.forward(n, x).

    `n` only contributes its leading (batch) dimension; `x` is unused,
    exactly as in the PyTorch module.
    """
    del x  # unused by the reference forward
    batch = n.shape[0]
    dim = result.shape[0]

    # torch.ones is float32 -> output dtype is promote(f32, param); clamp f64
    # (TPU-unfriendly, requires x64) down to f32.
    out_dtype = jnp.promote_types(jnp.float32, result.dtype)
    if out_dtype == jnp.float64:
        out_dtype = jnp.float32
    itemsize = jnp.dtype(out_dtype).itemsize

    # Fast path: tiny outputs — pallas_call/DMA setup overhead dominates and
    # XLA can fuse/elide the broadcast entirely.
    if batch * dim * itemsize < min_pallas_bytes:
        return jnp.broadcast_to(result.astype(out_dtype)[None, :], (batch, dim))

    gen, cores = _tpu_generation()
    budget = _block_budget_bytes(gen)

    # Lane-dense packing: present a last dim that is a multiple of 128 lanes
    # (avoids masked vst.msk partial stores) — but cap the packed row width so
    # odd dims (k0 up to 128) can't blow the VMEM budget.
    k = 1
    if dim % 128 != 0:
        k0 = 128 // math.gcd(dim, 128)
        packed_row_bytes = k0 * dim * itemsize
        if batch >= k0 and batch % k0 == 0 and packed_row_bytes <= (512 << 10):
            k = k0
    rows = batch // k
    width = dim * k

    # Param presented as a single (1, width) row (k tiled copies when packed).
    row = jnp.tile(result.astype(out_dtype), k).reshape(1, width)

    tb, tw = _pick_tiles(rows, width, itemsize, budget, cores)
    grid = (pl.cdiv(rows, tb), pl.cdiv(width, tw))

    # Scoped VMEM: 2 double-buffered output blocks + 2 param-row blocks + margin.
    block_bytes = tb * tw * itemsize
    vmem_needed = 2 * block_bytes + 2 * tw * itemsize + (2 << 20)
    vmem_limit = None
    if vmem_needed > (14 << 20):  # would be tight under the 16 MiB v5e default
        vmem_limit = min(max(vmem_needed, 32 << 20), 60 << 20)

    out = pl.pallas_call(
        _broadcast_param_kernel,
        out_shape=jax.ShapeDtypeStruct((rows, width), out_dtype),
        grid=grid,
        in_specs=[pl.BlockSpec((1, tw), lambda i, j: (0, j))],   # resident param row
        out_specs=pl.BlockSpec((tb, tw), lambda i, j: (i, j)),   # tiled over batch/width
        compiler_params=pltpu.CompilerParams(
            dimension_semantics=("parallel", "parallel"),
            vmem_limit_bytes=vmem_limit,
        ),
    )(row)

    # (rows, k*dim) -> (batch, dim) is a contiguous row-major reinterpretation.
    return out.reshape(batch, dim)


def _check(batch, dim, result, key, **kwargs):
    n = jax.random.normal(key, (batch, dim), dtype=jnp.float32)
    x = jax.random.normal(key, (batch, 4, 16, 16), dtype=jnp.float32)
    out = jax.block_until_ready(parameter_result_forward(n, x, result, **kwargs))
    ref = jnp.ones((batch, dim), jnp.float32) * result
    assert out.shape == (batch, dim), (out.shape, (batch, dim))
    assert out.dtype == ref.dtype, (out.dtype, ref.dtype)
    assert jnp.allclose(out, ref), f"mismatch at batch={batch}, dim={dim}"


if __name__ == "__main__":
    key = jax.random.PRNGKey(0)
    k_param, k_n = jax.random.split(key, 2)

    dim = 32
    p_min, p_max = -1.0, 1.0
    # Deterministic parameter init: uniform in [min, max), like torch.rand*(max-min)+min.
    result = jax.random.uniform(
        k_param, (dim,), dtype=jnp.float32, minval=p_min, maxval=p_max
    )

    # 1) tiny output -> non-Pallas broadcast fast path (batch=2, dim=32).
    _check(2, dim, result, k_n)

    # 2) same tiny shape, forced through the Pallas kernel (sub-128 fallback path).
    _check(2, dim, result, k_n, min_pallas_bytes=0)

    # 3) lane-dense packed path: batch divisible by k0 = 128/gcd(32,128) = 4.
    _check(256, dim, result, k_n, min_pallas_bytes=0)

    # 4) already lane-aligned dim (no packing needed).
    result128 = jax.random.uniform(
        k_param, (128,), dtype=jnp.float32, minval=p_min, maxval=p_max
    )
    _check(16, 128, result128, k_n, min_pallas_bytes=0)

    print("KERNEL_OK")
</pallas_src>

<mosaic_0001>
module attributes {stable_mosaic.version = 11 : i64} {
  func.func @_broadcast_param_kernel(%arg0: i32, %arg1: i32, %arg2: memref<1x32xf32, #tpu.memory_space<vmem>>, %arg3: memref<2x32xf32, #tpu.memory_space<vmem>>) attributes {dimension_semantics = [#tpu.dimension_semantics<parallel>, #tpu.dimension_semantics<parallel>], iteration_bounds = array<i64: 1, 1>, scalar_prefetch = 0 : i64, scratch_operands = 0 : i64, tpu.core_type = #tpu.core_type<tc>, window_params = [{transform_indices = @transform_0, window_bounds = array<i64: 1, 32>}, {transform_indices = @transform_1, window_bounds = array<i64: 2, 32>}]} {
    %c0 = arith.constant 0 : index
    %c0_0 = arith.constant 0 : index
    %0 = vector.load %arg2[%c0, %c0_0] : memref<1x32xf32, #tpu.memory_space<vmem>>, vector<1x32xf32>
    %1 = vector.shape_cast %0 : vector<1x32xf32> to vector<1x32xf32>
    %2 = vector.broadcast %1 : vector<1x32xf32> to vector<2x32xf32>
    %c0_1 = arith.constant 0 : index
    %c0_2 = arith.constant 0 : index
    %3 = vector.load %arg3[%c0_1, %c0_2] : memref<2x32xf32, #tpu.memory_space<vmem>>, vector<2x32xf32>
    tpu.vector_store %arg3[%c0_1, %c0_2], %2 {strides = array<i32>} : memref<2x32xf32, #tpu.memory_space<vmem>>, vector<2x32xf32>,
    return
  }
  func.func @transform_0(%arg0: i32, %arg1: i32) -> (i32, i32) {
    %c0_i32 = arith.constant 0 : i32
    %c0_i32_0 = arith.constant 0 : i32
    return %c0_i32, %arg1 : i32, i32
  }
  func.func @transform_1(%arg0: i32, %arg1: i32) -> (i32, i32) {
    %c0_i32 = arith.constant 0 : i32
    return %arg0, %arg1 : i32, i32
  }
}

</mosaic_0001>

<llo_original>
// kernel: tpu_custom_call.1
$region0: #{tpu_custom_call.1}
  #allocation0 [shape = 'u32[]', space=smem, size = 0x4, offset = 0x4, fixed_abs, tag = 'smem constant byte address 0x4 - core index']
  #allocation1 [shape = 'u32[144,128]{1,0:T(1,128)}', space=vmem, size = 0x12000, scoped, tag = 'internal scratch']
  %s0 = inlined_call_operand.hbm [shape: f32[1,32], index: 0, kind: input, shape index: {}]
  %s1 = inlined_call_operand.hbm [shape: f32[2,32], index: 1, kind: output, shape index: {}]
  %s2 = sld [smem:[#allocation0]]
  $region18: #{tpu_custom_call.1} parent=0
    _
  %s4 = ssub.s32 1, %s2
  %s5 = scalar_select 0, %s4, %s2
  $region1: #{tpu_custom_call.1} parent=0
    #allocation2 [shape = 'u8[512]{0}', space=vmem, size = 0x400, scoped, tag = 'input window, operand 0, single buffered']
    #allocation3 [shape = 's32[1]{0}', space=sflag, size = 0x4, scoped, tag = 'scoped memory for tpu_custom_call.1']
    #allocation4 [shape = 's32[1]{0}', space=sflag, size = 0x4, scoped, tag = 'scoped memory for tpu_custom_call.1']
    #allocation5 [shape = 'u8[1024]{0}', space=vmem, size = 0x400, scoped, tag = 'output window, operand 0, single buffered']
    %6 = vsyncpa [#allocation3], 0
    %7 = vsyncpa [#allocation4], 0
    // Predicated region
    $region2: #{tpu_custom_call.1} parent=1 // pred_check
      _
    $region3: #{tpu_custom_call.1} parent=1 // pred_check_branch
      %9 = sbr.rel (0) target = $region5
    $region4: #{tpu_custom_call.1} parent=1 // pred_region
      %s11 = ssub.s32 16, 16
      %12 = vsyncadd [#allocation3], %s11
      %s14 = sshll.u32 [#allocation2], 4
      %s15 = int_to_ptr.vmem [resolvable:$true] %s14
      %17 = dma.hbm_to_vmem [thread:$0]  %s0, 16, %s15, [#allocation3]
    $region5: #{tpu_custom_call.1} parent=1 // pred_fallthru
      _
    // Predicated region
    $region6: #{tpu_custom_call.1} parent=1 // pred_check
      _
    $region7: #{tpu_custom_call.1} parent=1 // pred_check_branch
      %19 = sbr.rel (0) target = $region9
    $region8: #{tpu_custom_call.1} parent=1 // pred_region
      %20 = dma.done [#allocation3], 16
    $region9: #{tpu_custom_call.1} parent=1 // pred_fallthru
      _
    %v21 = vld [vmem:[#allocation2] sm:$0x1]
    %v23 = vlaneseq
    %v24 = vshrl.u32 %v23, 7
    %v25 = vsub.s32 0, %v24
    %v26 = vrot.slane %v21, %v25
    %vm28 = vcmask 254976
    %29 = vst.msk [vmem:[#allocation5] sm:$0x3] %vm28, %v26
    // Predicated region
    $region10: #{tpu_custom_call.1} parent=1 // pred_check
      _
    $region11: #{tpu_custom_call.1} parent=1 // pred_check_branch
      %31 = sbr.rel (0) target = $region13
    $region12: #{tpu_custom_call.1} parent=1 // pred_region
      %s33 = ssub.s32 32, 32
      %34 = vsyncadd [#allocation4], %s33
      %s36 = sshll.u32 [#allocation5], 4
      %s37 = int_to_ptr.vmem [resolvable:$true] %s36
      %39 = dma.vmem_to_hbm [thread:$0]  %s37, 32, %s1, [#allocation4]
    $region13: #{tpu_custom_call.1} parent=1 // pred_fallthru
      _
    // Predicated region
    $region14: #{tpu_custom_call.1} parent=1 // pred_check
      _
    $region15: #{tpu_custom_call.1} parent=1 // pred_check_branch
      %41 = sbr.rel (0) target = $region17
    $region16: #{tpu_custom_call.1} parent=1 // pred_region
      %42 = dma.done [#allocation4], 32
    $region17: #{tpu_custom_call.1} parent=1 // pred_fallthru
      _
    %43 = vsyncpa [#allocation3], 1
    %44 = vsyncpa [#allocation4], 1

</llo_original>
